<compile_context>
chip_gen: v7x
topology: tpu7x:2x2x1
jax: 0.10.0
libtpu: 0.0.40
codegen_flags: <defaults>
</compile_context>

<pallas_src>
import jax
import jax.numpy as jnp
from jax import lax
from jax.experimental import pallas as pl
from jax.experimental.pallas import tpu as pltpu


def actor_kernel(xt_ref,                       # VMEM (S,  TB) bf16   state^T
                 w1_ref, b1_ref,               # VMEM (H1, S)  bf16, (H1, 1) f32
                 w2_ref, b2_ref,               # VMEM (H2, H1) bf16, (H2, 1) f32
                 w3_ref, b3_ref,               # VMEM (A,  H2) bf16, (A, 1)  f32
                 gumbel_ref,                   # VMEM (A,  TB) f32
                 out_ref):                     # VMEM (8,  TB) f32: action|logp|ent|pad
    # --- MXU hot path: bf16 inputs, f32 accumulation (feature-major layout) ---
    xt = xt_ref[...]
    h1 = jnp.maximum(
        jnp.dot(w1_ref[...], xt, preferred_element_type=jnp.float32)
        + b1_ref[...], 0.0)                                     # (H1, TB)
    h2 = jnp.maximum(
        jnp.dot(w2_ref[...], h1.astype(jnp.bfloat16),
                preferred_element_type=jnp.float32) + b2_ref[...], 0.0)  # (H2, TB)
    logits = (jnp.dot(w3_ref[...], h2.astype(jnp.bfloat16),
                      preferred_element_type=jnp.float32)
              + b3_ref[...])                                    # (A, TB)

    # --- softmax over the action axis (cheap sublane reductions), all f32 ----
    m = jnp.max(logits, axis=0, keepdims=True)                  # (1, TB)
    z = logits - m                                              # (A, TB)
    e = jnp.exp(z)
    s = jnp.sum(e, axis=0, keepdims=True)                       # (1, TB)
    log_s = jnp.log(s)
    log_probs = z - log_s                                       # (A, TB)
    # entropy = log(s) - sum(e*z)/s  (probs never materialized)
    ent = log_s - jnp.sum(e * z, axis=0, keepdims=True) / s     # (1, TB)

    # --- Categorical sampling via Gumbel-max ----------------------------------
    # TODO(synk): torch.distributions.Categorical.sample uses the torch RNG
    # stream; this draws the same distribution via Gumbel-max with jax.random
    # noise, so samples are not bitwise identical to torch.
    scores = log_probs + gumbel_ref[...]                        # (A, TB)
    A = logits.shape[0]
    ids = lax.broadcasted_iota(jnp.int32, logits.shape, 0)
    smax = jnp.max(scores, axis=0, keepdims=True)
    action = jnp.min(jnp.where(scores >= smax, ids, jnp.int32(A)),
                     axis=0, keepdims=True)                     # (1, TB) int32
    logp = jnp.sum(jnp.where(ids == action, log_probs, 0.0),
                   axis=0, keepdims=True)                       # (1, TB)

    # --- pack the three per-row scalars -> one lane-dense full-tile store -----
    sub = lax.broadcasted_iota(jnp.int32, out_ref.shape, 0)
    out_ref[...] = jnp.where(sub == 0, action.astype(jnp.float32),
                   jnp.where(sub == 1, logp,
                   jnp.where(sub == 2, ent, 0.0)))


def _round_up(x, m):
    return ((x + m - 1) // m) * m


def actor_forward(state, params, key, *, block_b=2048):
    """state: (B, S) float32. params: dict of weights. key: jax PRNG key."""
    B, S = state.shape
    w1, b1, w2, b2, w3, b3 = (params[k] for k in
                              ("w1", "b1", "w2", "b2", "w3", "b3"))
    H1, H2, A = w1.shape[1], w2.shape[1], w3.shape[1]

    # Batch lives on the lane axis -> tiles are multiples of 128.  Large tiles
    # amortize the ~0.35us/grid-step overhead; split into >=2 programs when the
    # batch allows so both v7x TensorCores get work.
    Bp = _round_up(B, 128)
    block_b = min(_round_up(block_b, 128), Bp)
    if Bp // block_b < 2 and Bp >= 256:
        block_b = _round_up(Bp // 2, 128)
    Bp = _round_up(Bp, block_b)
    grid = (Bp // block_b,)

    # Transposed, bf16, lane-padded state: (S, Bp).
    xt = jnp.pad(state.astype(jnp.bfloat16).T, ((0, 0), (0, Bp - B)))
    # Pre-transposed / pre-cast resident weights; column-vector f32 biases.
    w1t = w1.T.astype(jnp.bfloat16)                  # (H1, S)
    w2t = w2.T.astype(jnp.bfloat16)                  # (H2, H1)
    w3t = w3.T.astype(jnp.bfloat16)                  # (A, H2)
    b1t = b1.reshape(H1, 1).astype(jnp.float32)
    b2t = b2.reshape(H2, 1).astype(jnp.float32)
    b3t = b3.reshape(A, 1).astype(jnp.float32)
    # Gumbel noise for Categorical sampling (drawn outside the kernel).
    gumbel = jax.random.gumbel(key, (A, Bp), dtype=jnp.float32)

    resident = lambda i: (0, 0)      # weights/biases stay in VMEM across tiles
    batched = lambda i: (0, i)       # state / gumbel / output follow the grid

    grid_spec = pltpu.PrefetchScalarGridSpec(
        num_scalar_prefetch=0,
        grid=grid,
        in_specs=[
            pl.BlockSpec((S, block_b), batched),
            pl.BlockSpec((H1, S), resident), pl.BlockSpec((H1, 1), resident),
            pl.BlockSpec((H2, H1), resident), pl.BlockSpec((H2, 1), resident),
            pl.BlockSpec((A, H2), resident), pl.BlockSpec((A, 1), resident),
            pl.BlockSpec((A, block_b), batched),
        ],
        out_specs=pl.BlockSpec((8, block_b), batched),
    )

    flops = 2 * Bp * (S * H1 + H1 * H2 + H2 * A)
    transcendentals = Bp * (A + 2)
    bytes_accessed = (2 * Bp * S + 4 * A * Bp + 4 * 8 * Bp
                      + 2 * (S * H1 + H1 * H2 + H2 * A)
                      + 4 * (H1 + H2 + A))

    fn = pl.pallas_call(
        actor_kernel,
        out_shape=jax.ShapeDtypeStruct((8, Bp), jnp.float32),
        grid_spec=grid_spec,
        compiler_params=pltpu.CompilerParams(
            dimension_semantics=("parallel",)),
        cost_estimate=pl.CostEstimate(flops=flops,
                                      transcendentals=transcendentals,
                                      bytes_accessed=bytes_accessed),
    )
    packed = fn(xt, w1t, b1t, w2t, b2t, w3t, b3t, gumbel)
    action = packed[0, :B].astype(jnp.int32)
    log_prob = packed[1, :B]
    entropy = packed[2, :B]
    return action, log_prob, entropy


def orthogonal(key, shape, scale=1.0):
    """Orthogonal init matching torch.nn.init.orthogonal_ for 2-D weights."""
    rows, cols = shape
    a = jax.random.normal(key, (max(rows, cols), min(rows, cols)), jnp.float32)
    q, r = jnp.linalg.qr(a)                      # q: (max, min), orthonormal columns
    q = q * jnp.sign(jnp.diagonal(r))[None, :]
    if rows < cols:
        q = q.T                                  # (rows, cols) with orthonormal rows
    return (scale * q).astype(jnp.float32)


def init_actor_params(key, state_size, hidden_sizes, action_size):
    k1, k2, k3 = jax.random.split(key, 3)
    h1, h2 = hidden_sizes
    return {
        "w1": orthogonal(k1, (state_size, h1)),
        "b1": jnp.zeros((1, h1), jnp.float32),
        "w2": orthogonal(k2, (h1, h2)),
        "b2": jnp.zeros((1, h2), jnp.float32),
        "w3": orthogonal(k3, (h2, action_size)),
        "b3": jnp.zeros((1, action_size), jnp.float32),
    }


if __name__ == "__main__":
    key = jax.random.PRNGKey(0)
    k_params, k_state, k_sample = jax.random.split(key, 3)

    # Small shapes consistent with the module: state_size=24,
    # hidden_sizes_actor=[32, 32], action_size=4, batch=2.
    B, S, H1, H2, A = 2, 24, 32, 32, 4
    params = init_actor_params(k_params, S, (H1, H2), A)
    state = jax.random.normal(k_state, (B, S), dtype=jnp.float32)

    action, log_prob, entropy = actor_forward(state, params, k_sample)
    jax.block_until_ready((action, log_prob, entropy))

    assert action.shape == (B,) and action.dtype == jnp.int32
    assert log_prob.shape == (B,) and entropy.shape == (B,)
    assert bool(jnp.all(action >= 0)) and bool(jnp.all(action < A))
    assert bool(jnp.all(log_prob <= 0.0))
    assert bool(jnp.all(entropy >= -1e-5))   # tolerate fp rounding near zero

    print("KERNEL_OK")
</pallas_src>

<mosaic_0001>
module attributes {stable_mosaic.version = 11 : i64} {
  func.func @actor_kernel(%arg0: i32, %arg1: memref<24x128xbf16, #tpu.memory_space<vmem>>, %arg2: memref<32x24xbf16, #tpu.memory_space<vmem>>, %arg3: memref<32x1xf32, #tpu.memory_space<vmem>>, %arg4: memref<32x32xbf16, #tpu.memory_space<vmem>>, %arg5: memref<32x1xf32, #tpu.memory_space<vmem>>, %arg6: memref<4x32xbf16, #tpu.memory_space<vmem>>, %arg7: memref<4x1xf32, #tpu.memory_space<vmem>>, %arg8: memref<4x128xf32, #tpu.memory_space<vmem>>, %arg9: memref<8x128xf32, #tpu.memory_space<vmem>>) attributes {dimension_semantics = [#tpu.dimension_semantics<parallel>], iteration_bounds = array<i64: 1>, scalar_prefetch = 0 : i64, scratch_operands = 0 : i64, tpu.core_type = #tpu.core_type<tc>, window_params = [{transform_indices = @transform_0, window_bounds = array<i64: 24, 128>}, {pipeline_mode = #tpu.pipeline_mode<synchronous>, transform_indices = @transform_1, window_bounds = array<i64: 32, 24>}, {pipeline_mode = #tpu.pipeline_mode<synchronous>, transform_indices = @transform_2, window_bounds = array<i64: 32, 1>}, {pipeline_mode = #tpu.pipeline_mode<synchronous>, transform_indices = @transform_3, window_bounds = array<i64: 32, 32>}, {pipeline_mode = #tpu.pipeline_mode<synchronous>, transform_indices = @transform_4, window_bounds = array<i64: 32, 1>}, {pipeline_mode = #tpu.pipeline_mode<synchronous>, transform_indices = @transform_5, window_bounds = array<i64: 4, 32>}, {pipeline_mode = #tpu.pipeline_mode<synchronous>, transform_indices = @transform_6, window_bounds = array<i64: 4, 1>}, {transform_indices = @transform_7, window_bounds = array<i64: 4, 128>}, {transform_indices = @transform_8, window_bounds = array<i64: 8, 128>}]} {
    %c0 = arith.constant 0 : index
    %c0_0 = arith.constant 0 : index
    %0 = vector.load %arg1[%c0, %c0_0] : memref<24x128xbf16, #tpu.memory_space<vmem>>, vector<24x128xbf16>
    %c0_1 = arith.constant 0 : index
    %c0_2 = arith.constant 0 : index
    %1 = vector.load %arg2[%c0_1, %c0_2] : memref<32x24xbf16, #tpu.memory_space<vmem>>, vector<32x24xbf16>
    %cst = arith.constant dense<0.000000e+00> : vector<32x128xf32>
    %2 = tpu.matmul %1, %0, %cst {dimension_numbers = #tpu.dot_dimension_numbers<[1], [0], [0], [1], [0, 0, 1, 1], [], []>} : vector<32x24xbf16>, vector<24x128xbf16>, vector<32x128xf32> -> vector<32x128xf32>
    %c0_3 = arith.constant 0 : index
    %c0_4 = arith.constant 0 : index
    %3 = vector.load %arg3[%c0_3, %c0_4] : memref<32x1xf32, #tpu.memory_space<vmem>>, vector<32x1xf32>
    %4 = vector.broadcast %3 : vector<32x1xf32> to vector<32x128xf32>
    %5 = arith.addf %2, %4 : vector<32x128xf32>
    %cst_5 = arith.constant 0.000000e+00 : f32
    %6 = vector.broadcast %cst_5 : f32 to vector<32x128xf32>
    %7 = arith.maximumf %5, %6 : vector<32x128xf32>
    %c0_6 = arith.constant 0 : index
    %c0_7 = arith.constant 0 : index
    %8 = vector.load %arg4[%c0_6, %c0_7] : memref<32x32xbf16, #tpu.memory_space<vmem>>, vector<32x32xbf16>
    %9 = arith.truncf %7 : vector<32x128xf32> to vector<32x128xbf16>
    %cst_8 = arith.constant dense<0.000000e+00> : vector<32x128xf32>
    %10 = tpu.matmul %8, %9, %cst_8 {dimension_numbers = #tpu.dot_dimension_numbers<[1], [0], [0], [1], [0, 0, 1, 1], [], []>} : vector<32x32xbf16>, vector<32x128xbf16>, vector<32x128xf32> -> vector<32x128xf32>
    %c0_9 = arith.constant 0 : index
    %c0_10 = arith.constant 0 : index
    %11 = vector.load %arg5[%c0_9, %c0_10] : memref<32x1xf32, #tpu.memory_space<vmem>>, vector<32x1xf32>
    %12 = vector.broadcast %11 : vector<32x1xf32> to vector<32x128xf32>
    %13 = arith.addf %10, %12 : vector<32x128xf32>
    %cst_11 = arith.constant 0.000000e+00 : f32
    %14 = vector.broadcast %cst_11 : f32 to vector<32x128xf32>
    %15 = arith.maximumf %13, %14 : vector<32x128xf32>
    %c0_12 = arith.constant 0 : index
    %c0_13 = arith.constant 0 : index
    %16 = vector.load %arg6[%c0_12, %c0_13] : memref<4x32xbf16, #tpu.memory_space<vmem>>, vector<4x32xbf16>
    %17 = arith.truncf %15 : vector<32x128xf32> to vector<32x128xbf16>
    %cst_14 = arith.constant dense<0.000000e+00> : vector<4x128xf32>
    %18 = tpu.matmul %16, %17, %cst_14 {dimension_numbers = #tpu.dot_dimension_numbers<[1], [0], [0], [1], [0, 0, 1, 1], [], []>} : vector<4x32xbf16>, vector<32x128xbf16>, vector<4x128xf32> -> vector<4x128xf32>
    %c0_15 = arith.constant 0 : index
    %c0_16 = arith.constant 0 : index
    %19 = vector.load %arg7[%c0_15, %c0_16] : memref<4x1xf32, #tpu.memory_space<vmem>>, vector<4x1xf32>
    %20 = vector.broadcast %19 : vector<4x1xf32> to vector<4x128xf32>
    %21 = arith.addf %18, %20 : vector<4x128xf32>
    %cst_17 = arith.constant dense<0xFF800000> : vector<128xf32>
    %22 = vector.multi_reduction <maximumf>, %21, %cst_17 [0] : vector<4x128xf32> to vector<128xf32>
    %23 = vector.shape_cast %22 : vector<128xf32> to vector<1x128xf32>
    %24 = vector.broadcast %23 : vector<1x128xf32> to vector<4x128xf32>
    %25 = arith.subf %21, %24 : vector<4x128xf32>
    %26 = math.exp %25 : vector<4x128xf32>
    %cst_18 = arith.constant dense<0.000000e+00> : vector<128xf32>
    %27 = vector.multi_reduction <add>, %26, %cst_18 [0] : vector<4x128xf32> to vector<128xf32>
    %28 = vector.shape_cast %27 : vector<128xf32> to vector<1x128xf32>
    %29 = math.log %28 : vector<1x128xf32>
    %30 = vector.broadcast %29 : vector<1x128xf32> to vector<4x128xf32>
    %31 = arith.subf %25, %30 : vector<4x128xf32>
    %32 = arith.mulf %26, %25 : vector<4x128xf32>
    %cst_19 = arith.constant dense<0.000000e+00> : vector<128xf32>
    %33 = vector.multi_reduction <add>, %32, %cst_19 [0] : vector<4x128xf32> to vector<128xf32>
    %34 = vector.shape_cast %33 : vector<128xf32> to vector<1x128xf32>
    %35 = arith.divf %34, %28 : vector<1x128xf32>
    %36 = arith.subf %29, %35 : vector<1x128xf32>
    %c0_20 = arith.constant 0 : index
    %c0_21 = arith.constant 0 : index
    %37 = vector.load %arg8[%c0_20, %c0_21] : memref<4x128xf32, #tpu.memory_space<vmem>>, vector<4x128xf32>
    %38 = arith.addf %31, %37 : vector<4x128xf32>
    %39 = tpu.iota {dimensions = array<i32: 0>} : vector<4x128xi32>
    %cst_22 = arith.constant dense<0xFF800000> : vector<128xf32>
    %40 = vector.multi_reduction <maximumf>, %38, %cst_22 [0] : vector<4x128xf32> to vector<128xf32>
    %41 = vector.shape_cast %40 : vector<128xf32> to vector<1x128xf32>
    %42 = vector.broadcast %41 : vector<1x128xf32> to vector<4x128xf32>
    %43 = arith.cmpf oge, %38, %42 : vector<4x128xf32>
    %c4_i32 = arith.constant 4 : i32
    %44 = vector.broadcast %c4_i32 : i32 to vector<4x128xi32>
    %45 = arith.select %43, %39, %44 : vector<4x128xi1>, vector<4x128xi32>
    %cst_23 = arith.constant dense<2147483647> : vector<128xi32>
    %46 = vector.multi_reduction <minsi>, %45, %cst_23 [0] : vector<4x128xi32> to vector<128xi32>
    %47 = vector.shape_cast %46 : vector<128xi32> to vector<1x128xi32>
    %48 = vector.broadcast %47 : vector<1x128xi32> to vector<4x128xi32>
    %49 = arith.cmpi eq, %39, %48 : vector<4x128xi32>
    %cst_24 = arith.constant 0.000000e+00 : f32
    %50 = vector.broadcast %cst_24 : f32 to vector<4x128xf32>
    %51 = arith.select %49, %31, %50 : vector<4x128xi1>, vector<4x128xf32>
    %cst_25 = arith.constant dense<0.000000e+00> : vector<128xf32>
    %52 = vector.multi_reduction <add>, %51, %cst_25 [0] : vector<4x128xf32> to vector<128xf32>
    %53 = vector.shape_cast %52 : vector<128xf32> to vector<1x128xf32>
    %54 = tpu.iota {dimensions = array<i32: 0>} : vector<8x128xi32>
    %c0_i32 = arith.constant 0 : i32
    %55 = vector.broadcast %c0_i32 : i32 to vector<8x128xi32>
    %56 = arith.cmpi eq, %54, %55 : vector<8x128xi32>
    %57 = arith.sitofp %47 : vector<1x128xi32> to vector<1x128xf32>
    %c1_i32 = arith.constant 1 : i32
    %58 = vector.broadcast %c1_i32 : i32 to vector<8x128xi32>
    %59 = arith.cmpi eq, %54, %58 : vector<8x128xi32>
    %c2_i32 = arith.constant 2 : i32
    %60 = vector.broadcast %c2_i32 : i32 to vector<8x128xi32>
    %61 = arith.cmpi eq, %54, %60 : vector<8x128xi32>
    %cst_26 = arith.constant 0.000000e+00 : f32
    %62 = vector.shape_cast %36 : vector<1x128xf32> to vector<1x128xf32>
    %63 = vector.broadcast %62 : vector<1x128xf32> to vector<8x128xf32>
    %64 = vector.broadcast %cst_26 : f32 to vector<8x128xf32>
    %65 = arith.select %61, %63, %64 : vector<8x128xi1>, vector<8x128xf32>
    %66 = vector.shape_cast %53 : vector<1x128xf32> to vector<1x128xf32>
    %67 = vector.broadcast %66 : vector<1x128xf32> to vector<8x128xf32>
    %68 = arith.select %59, %67, %65 : vector<8x128xi1>, vector<8x128xf32>
    %69 = vector.shape_cast %57 : vector<1x128xf32> to vector<1x128xf32>
    %70 = vector.broadcast %69 : vector<1x128xf32> to vector<8x128xf32>
    %71 = arith.select %56, %70, %68 : vector<8x128xi1>, vector<8x128xf32>
    %c0_27 = arith.constant 0 : index
    %c0_28 = arith.constant 0 : index
    %72 = vector.load %arg9[%c0_27, %c0_28] : memref<8x128xf32, #tpu.memory_space<vmem>>, vector<8x128xf32>
    tpu.vector_store %arg9[%c0_27, %c0_28], %71 {strides = array<i32>} : memref<8x128xf32, #tpu.memory_space<vmem>>, vector<8x128xf32>,
    return
  }
  func.func @transform_0(%arg0: i32) -> (i32, i32) {
    %c0_i32 = arith.constant 0 : i32
    %c0_i32_0 = arith.constant 0 : i32
    return %c0_i32, %arg0 : i32, i32
  }
  func.func @transform_1(%arg0: i32) -> (i32, i32) {
    %c0_i32 = arith.constant 0 : i32
    %c0_i32_0 = arith.constant 0 : i32
    %c0_i32_1 = arith.constant 0 : i32
    return %c0_i32, %c0_i32_0 : i32, i32
  }
  func.func @transform_2(%arg0: i32) -> (i32, i32) {
    %c0_i32 = arith.constant 0 : i32
    %c0_i32_0 = arith.constant 0 : i32
    %c0_i32_1 = arith.constant 0 : i32
    return %c0_i32, %c0_i32_0 : i32, i32
  }
  func.func @transform_3(%arg0: i32) -> (i32, i32) {
    %c0_i32 = arith.constant 0 : i32
    %c0_i32_0 = arith.constant 0 : i32
    %c0_i32_1 = arith.constant 0 : i32
    return %c0_i32, %c0_i32_0 : i32, i32
  }
  func.func @transform_4(%arg0: i32) -> (i32, i32) {
    %c0_i32 = arith.constant 0 : i32
    %c0_i32_0 = arith.constant 0 : i32
    %c0_i32_1 = arith.constant 0 : i32
    return %c0_i32, %c0_i32_0 : i32, i32
  }
  func.func @transform_5(%arg0: i32) -> (i32, i32) {
    %c0_i32 = arith.constant 0 : i32
    %c0_i32_0 = arith.constant 0 : i32
    %c0_i32_1 = arith.constant 0 : i32
    return %c0_i32, %c0_i32_0 : i32, i32
  }
  func.func @transform_6(%arg0: i32) -> (i32, i32) {
    %c0_i32 = arith.constant 0 : i32
    %c0_i32_0 = arith.constant 0 : i32
    %c0_i32_1 = arith.constant 0 : i32
    return %c0_i32, %c0_i32_0 : i32, i32
  }
  func.func @transform_7(%arg0: i32) -> (i32, i32) {
    %c0_i32 = arith.constant 0 : i32
    %c0_i32_0 = arith.constant 0 : i32
    return %c0_i32, %arg0 : i32, i32
  }
  func.func @transform_8(%arg0: i32) -> (i32, i32) {
    %c0_i32 = arith.constant 0 : i32
    %c0_i32_0 = arith.constant 0 : i32
    return %c0_i32, %arg0 : i32, i32
  }
}

</mosaic_0001>

<llo_original>
// kernel: tpu_custom_call.1
$region0: #{tpu_custom_call.1}
  #allocation0 [shape = 'u32[]', space=smem, size = 0x4, offset = 0x4, fixed_abs, tag = 'smem constant byte address 0x4 - core index']
  #allocation1 [shape = 'u32[144,128]{1,0:T(1,128)}', space=vmem, size = 0x12000, scoped, tag = 'internal scratch']
  %s0 = inlined_call_operand.vmem [shape: bf16[24,128], index: 0, kind: input, shape index: {}]
  %s1 = inlined_call_operand.vmem [shape: bf16[32,24], index: 1, kind: input, shape index: {}]
  %s2 = inlined_call_operand.vmem [shape: f32[32,1], index: 2, kind: input, shape index: {}]
  %s3 = inlined_call_operand.vmem [shape: bf16[32,32], index: 3, kind: input, shape index: {}]
  %s4 = inlined_call_operand.vmem [shape: f32[32,1], index: 4, kind: input, shape index: {}]
  %s5 = inlined_call_operand.vmem [shape: bf16[4,32], index: 5, kind: input, shape index: {}]
  %s6 = inlined_call_operand.vmem [shape: f32[4,1], index: 6, kind: input, shape index: {}]
  %s7 = inlined_call_operand.vmem [shape: f32[4,128], index: 7, kind: input, shape index: {}]
  %s8 = inlined_call_operand.hbm [shape: f32[8,128], index: 8, kind: output, shape index: {}]
  %s9 = sld [smem:[#allocation0]]
  $region42: #{tpu_custom_call.1} parent=0
    _
  %s11 = ssub.s32 1, %s9
  %s12 = scalar_select 0, %s11, %s9
  $region1: #{tpu_custom_call.1} parent=0
    #allocation2 [shape = 'u8[4096]{0}', space=vmem, size = 0x1000, scoped, tag = 'output window, operand 0, single buffered']
    #allocation3 [shape = 's32[1]{0}', space=sflag, size = 0x4, scoped, tag = 'scoped memory for tpu_custom_call.1']
    %13 = vsyncpa [#allocation3], 0
    // Predicated region
    $region2: #{tpu_custom_call.1} parent=1 // pred_check
      _
    $region3: #{tpu_custom_call.1} parent=1 // pred_check_branch
      %15 = sbr.rel (0) target = $region5
    $region4: #{tpu_custom_call.1} parent=1 // pred_region
      _
    $region5: #{tpu_custom_call.1} parent=1 // pred_fallthru
      _
    // Predicated region
    $region6: #{tpu_custom_call.1} parent=1 // pred_check
      _
    $region7: #{tpu_custom_call.1} parent=1 // pred_check_branch
      %17 = sbr.rel (0) target = $region9
    $region8: #{tpu_custom_call.1} parent=1 // pred_region
      _
    $region9: #{tpu_custom_call.1} parent=1 // pred_fallthru
      _
    // Predicated region
    $region10: #{tpu_custom_call.1} parent=1 // pred_check
      _
    $region11: #{tpu_custom_call.1} parent=1 // pred_check_branch
      %19 = sbr.rel (0) target = $region13
    $region12: #{tpu_custom_call.1} parent=1 // pred_region
      _
    $region13: #{tpu_custom_call.1} parent=1 // pred_fallthru
      _
    // Predicated region
    $region14: #{tpu_custom_call.1} parent=1 // pred_check
      _
    $region15: #{tpu_custom_call.1} parent=1 // pred_check_branch
      %21 = sbr.rel (0) target = $region17
    $region16: #{tpu_custom_call.1} parent=1 // pred_region
      _
    $region17: #{tpu_custom_call.1} parent=1 // pred_fallthru
      _
    // Predicated region
    $region18: #{tpu_custom_call.1} parent=1 // pred_check
      _
    $region19: #{tpu_custom_call.1} parent=1 // pred_check_branch
      %23 = sbr.rel (0) target = $region21
    $region20: #{tpu_custom_call.1} parent=1 // pred_region
      _
    $region21: #{tpu_custom_call.1} parent=1 // pred_fallthru
      _
    // Predicated region
    $region22: #{tpu_custom_call.1} parent=1 // pred_check
      _
    $region23: #{tpu_custom_call.1} parent=1 // pred_check_branch
      %25 = sbr.rel (0) target = $region25
    $region24: #{tpu_custom_call.1} parent=1 // pred_region
      _
    $region25: #{tpu_custom_call.1} parent=1 // pred_fallthru
      _
    // Predicated region
    $region26: #{tpu_custom_call.1} parent=1 // pred_check
      _
    $region27: #{tpu_custom_call.1} parent=1 // pred_check_branch
      %27 = sbr.rel (0) target = $region29
    $region28: #{tpu_custom_call.1} parent=1 // pred_region
      _
    $region29: #{tpu_custom_call.1} parent=1 // pred_fallthru
      _
    // Predicated region
    $region30: #{tpu_custom_call.1} parent=1 // pred_check
      _
    $region31: #{tpu_custom_call.1} parent=1 // pred_check_branch
      %29 = sbr.rel (0) target = $region33
    $region32: #{tpu_custom_call.1} parent=1 // pred_region
      _
    $region33: #{tpu_custom_call.1} parent=1 // pred_fallthru
      _
    %v31 = vld [vmem:[%s0] sm:$0xf]
    %v32 = vld [vmem:[%s0 + $0x4] sm:$0xf]
    %v33 = vld [vmem:[%s0 + $0x8] sm:$0xf]
    %v34 = vld [vmem:[%s1] sm:$0xf]
    %v35 = vld [vmem:[%s1 + $0x4] sm:$0xf]
    %v36 = vld [vmem:[%s1 + $0x8] sm:$0xf]
    %v37 = vld [vmem:[%s1 + $0xc] sm:$0xf]
    %v38 = vld [vmem:[%s2] sm:$0xff]
    %v39 = vld [vmem:[%s2 + $0x8] sm:$0xff]
    %v40 = vld [vmem:[%s2 + $0x10] sm:$0xff]
    %v41 = vld [vmem:[%s2 + $0x18] sm:$0xff]
    %43 = vset.pattern.permute.xlu0 0
    %44 = vperm.xlu0 %43, %v38
    %v45 = vpop.permute.xlu0 %44
    %48 = vset.pattern.permute.xlu0 0
    %49 = vperm.xlu0 %48, %v39
    %v50 = vpop.permute.xlu0 %49
    %53 = vset.pattern.permute.xlu0 0
    %54 = vperm.xlu0 %53, %v40
    %v55 = vpop.permute.xlu0 %54
    %58 = vset.pattern.permute.xlu0 0
    %59 = vperm.xlu0 %58, %v41
    %v60 = vpop.permute.xlu0 %59
    %v66 = vunpack.c.l.b16 %v34
    %v67 = vunpack.c.l.b16 %v35
    %v68 = vunpack.c.l.b16 %v36
    %v69 = vunpack.c.l.b16 %v37
    %v70 = vpack.c.b16 %v67, %v66
    %v71 = vpack.c.b16 %v69, %v68
    %v75 = vunpack.c.l.b16 %v31
    %v76 = vunpack.c.l.b16 %v32
    %v77 = vunpack.c.l.b16 %v33
    %v78 = vpack.c.b16 %v76, %v75
    %v79 = vpack.c.b16 %v77, %v77
    %vm81 = vcmask 195584
    %v83 = vsel %vm81, %v70, 0
    %v86 = vsel %vm81, %v71, 0
    %vm88 = vcmask 1043456
    %v90 = vsel %vm88, %v79, 0
    %92 = vmatprep.subr.bf16.mxu0 0
    %93 = vmatpush1.bf16.msra.mxu0 %v78
    %94 = vmatprep.subr.bf16.mxu0 0
    %95 = vmatpush1.bf16.msra.mxu0 %v90
    %96 = vmatprep.subr.bf16.mxu0 0
    %97 = vmatpush1.bf16.msra.mxu0 0
    %98 = vmatprep.subr.bf16.mxu0 0
    %99 = vmatpush1.bf16.msra.mxu0 0
    %100 = vmatprep.subr.bf16.mxu0 0
    %101 = vmatpush1.bf16.msra.mxu0 0
    %102 = vmatprep.subr.bf16.mxu0 0
    %103 = vmatpush1.bf16.msra.mxu0 0
    %104 = vmatprep.subr.bf16.mxu0 0
    %105 = vmatpush1.bf16.msra.mxu0 0
    %106 = vmatprep.subr.bf16.mxu0 0
    %107 = vmatpush1.bf16.msra.mxu0 0
    %108 = vmatprep.subr.bf16.mxu0 0
    %109 = vmatpush1.bf16.msra.mxu0 0
    %110 = vmatprep.subr.bf16.mxu0 0
    %111 = vmatpush1.bf16.msra.mxu0 0
    %112 = vmatprep.subr.bf16.mxu0 0
    %113 = vmatpush1.bf16.msra.mxu0 0
    %114 = vmatprep.subr.bf16.mxu0 0
    %115 = vmatpush1.bf16.msra.mxu0 0
    %116 = vmatprep.subr.bf16.mxu0 0
    %117 = vmatpush1.bf16.msra.mxu0 0
    %118 = vmatprep.subr.bf16.mxu0 0
    %119 = vmatpush1.bf16.msra.mxu0 0
    %120 = vmatprep.subr.bf16.mxu0 0
    %121 = vmatpush1.bf16.msra.mxu0 0
    %122 = vmatprep.subr.bf16.mxu0 0
    %123 = vmatpush1.bf16.msra.mxu0 0
    %124 = vmatprep.mubr.bf16.mxu0 0
    %125 = vmatmul.mubr.bf16.gmra.mrb[0].mxu0 %v83
    %v126 = vpop.f32.mrb[0].mxu0
    %v127 = vadd.f32 %v45, %v126
    %v128 = vpop.f32.mrb[0].mxu0
    %v129 = vpop.f32.mrb[0].mxu0
    %v130 = vadd.f32 %v50, %v129
    %v131 = vpop.f32.mrb[0].mxu0
    %132 = vmatprep.mubr.bf16.mxu0 0
    %133 = vmatmul.mubr.bf16.gmra.mrb[0].mxu0 %v86
    %v134 = vpop.f32.mrb[0].mxu0
    %v135 = vadd.f32 %v55, %v134
    %v136 = vpop.f32.mrb[0].mxu0
    %v137 = vpop.f32.mrb[0].mxu0
    %v138 = vadd.f32 %v60, %v137
    %v139 = vpop.f32.mrb[0].mxu0
    %140 = vdwg.mxu0
    %v141 = vmax.f32 %v127, 0.0
    %v142 = vmax.f32 %v130, 0.0
    %v143 = vmax.f32 %v135, 0.0
    %v144 = vmax.f32 %v138, 0.0
    %v145 = vld [vmem:[%s3] sm:$0xf]
    %v146 = vld [vmem:[%s3 + $0x4] sm:$0xf]
    %v147 = vld [vmem:[%s3 + $0x8] sm:$0xf]
    %v148 = vld [vmem:[%s3 + $0xc] sm:$0xf]
    %v149 = vpack.c.bf16 %v142, %v141
    %v150 = vpack.c.bf16 %v144, %v143
    %v151 = vld [vmem:[%s4] sm:$0xff]
    %v152 = vld [vmem:[%s4 + $0x8] sm:$0xff]
    %v153 = vld [vmem:[%s4 + $0x10] sm:$0xff]
    %v154 = vld [vmem:[%s4 + $0x18] sm:$0xff]
    %156 = vset.pattern.permute.xlu0 0
    %157 = vperm.xlu0 %156, %v151
    %v158 = vpop.permute.xlu0 %157
    %161 = vset.pattern.permute.xlu0 0
    %162 = vperm.xlu0 %161, %v152
    %v163 = vpop.permute.xlu0 %162
    %166 = vset.pattern.permute.xlu0 0
    %167 = vperm.xlu0 %166, %v153
    %v168 = vpop.permute.xlu0 %167
    %171 = vset.pattern.permute.xlu0 0
    %172 = vperm.xlu0 %171, %v154
    %v173 = vpop.permute.xlu0 %172
    %v179 = vunpack.c.l.b16 %v145
    %v180 = vunpack.c.l.b16 %v146
    %v181 = vunpack.c.l.b16 %v147
    %v182 = vunpack.c.l.b16 %v148
    %v183 = vpack.c.b16 %v180, %v179
    %v184 = vpack.c.b16 %v182, %v181
    %vm185 = vcmask 261120
    %v187 = vsel %vm185, %v183, 0
    %v190 = vsel %vm185, %v184, 0
    %192 = vmatprep.subr.bf16.mxu0 0
    %193 = vmatpush1.bf16.msra.mxu0 %v149
    %194 = vmatprep.subr.bf16.mxu0 0
    %195 = vmatpush1.bf16.msra.mxu0 %v150
    %196 = vmatprep.subr.bf16.mxu0 0
    %197 = vmatpush1.bf16.msra.mxu0 0
    %198 = vmatprep.subr.bf16.mxu0 0
    %199 = vmatpush1.bf16.msra.mxu0 0
    %200 = vmatprep.subr.bf16.mxu0 0
    %201 = vmatpush1.bf16.msra.mxu0 0
    %202 = vmatprep.subr.bf16.mxu0 0
    %203 = vmatpush1.bf16.msra.mxu0 0
    %204 = vmatprep.subr.bf16.mxu0 0
    %205 = vmatpush1.bf16.msra.mxu0 0
    %206 = vmatprep.subr.bf16.mxu0 0
    %207 = vmatpush1.bf16.msra.mxu0 0
    %208 = vmatprep.subr.bf16.mxu0 0
    %209 = vmatpush1.bf16.msra.mxu0 0
    %210 = vmatprep.subr.bf16.mxu0 0
    %211 = vmatpush1.bf16.msra.mxu0 0
    %212 = vmatprep.subr.bf16.mxu0 0
    %213 = vmatpush1.bf16.msra.mxu0 0
    %214 = vmatprep.subr.bf16.mxu0 0
    %215 = vmatpush1.bf16.msra.mxu0 0
    %216 = vmatprep.subr.bf16.mxu0 0
    %217 = vmatpush1.bf16.msra.mxu0 0
    %218 = vmatprep.subr.bf16.mxu0 0
    %219 = vmatpush1.bf16.msra.mxu0 0
    %220 = vmatprep.subr.bf16.mxu0 0
    %221 = vmatpush1.bf16.msra.mxu0 0
    %222 = vmatprep.subr.bf16.mxu0 0
    %223 = vmatpush1.bf16.msra.mxu0 0
    %224 = vmatprep.mubr.bf16.mxu0 0
    %225 = vmatmul.mubr.bf16.gmra.mrb[0].mxu0 %v187
    %v226 = vpop.f32.mrb[0].mxu0
    %v227 = vadd.f32 %v158, %v226
    %v228 = vpop.f32.mrb[0].mxu0
    %v229 = vpop.f32.mrb[0].mxu0
    %v230 = vadd.f32 %v163, %v229
    %v231 = vpop.f32.mrb[0].mxu0
    %232 = vmatprep.mubr.bf16.mxu0 0
    %233 = vmatmul.mubr.bf16.gmra.mrb[0].mxu0 %v190
    %v234 = vpop.f32.mrb[0].mxu0
    %v235 = vadd.f32 %v168, %v234
    %v236 = vpop.f32.mrb[0].mxu0
    %v237 = vpop.f32.mrb[0].mxu0
    %v238 = vadd.f32 %v173, %v237
    %v239 = vpop.f32.mrb[0].mxu0
    %240 = vdwg.mxu0
    %v241 = vmax.f32 %v227, 0.0
    %v242 = vmax.f32 %v230, 0.0
    %v243 = vmax.f32 %v235, 0.0
    %v244 = vmax.f32 %v238, 0.0
    %v245 = vld [vmem:[%s5] sm:$0x3]
    %v246 = vpack.c.bf16 %v242, %v241
    %v247 = vpack.c.bf16 %v244, %v243
    %v248 = vld [vmem:[%s6] sm:$0xf]
    %250 = vset.pattern.permute.xlu0 0
    %251 = vperm.xlu0 %250, %v248
    %v252 = vpop.permute.xlu0 %251
    %v255 = vsel %vm185, %v245, 0
    %257 = vmatprep.subr.bf16.mxu0 0
    %258 = vmatpush1.bf16.msra.mxu0 %v246
    %259 = vmatprep.subr.bf16.mxu0 0
    %260 = vmatpush1.bf16.msra.mxu0 %v247
    %261 = vmatprep.subr.bf16.mxu0 0
    %262 = vmatpush1.bf16.msra.mxu0 0
    %263 = vmatprep.subr.bf16.mxu0 0
    %264 = vmatpush1.bf16.msra.mxu0 0
    %265 = vmatprep.subr.bf16.mxu0 0
    %266 = vmatpush1.bf16.msra.mxu0 0
    %267 = vmatprep.subr.bf16.mxu0 0
    %268 = vmatpush1.bf16.msra.mxu0 0
    %269 = vmatprep.subr.bf16.mxu0 0
    %270 = vmatpush1.bf16.msra.mxu0 0
    %271 = vmatprep.subr.bf16.mxu0 0
    %272 = vmatpush1.bf16.msra.mxu0 0
    %273 = vmatprep.subr.bf16.mxu0 0
    %274 = vmatpush1.bf16.msra.mxu0 0
    %275 = vmatprep.subr.bf16.mxu0 0
    %276 = vmatpush1.bf16.msra.mxu0 0
    %277 = vmatprep.subr.bf16.mxu0 0
    %278 = vmatpush1.bf16.msra.mxu0 0
    %279 = vmatprep.subr.bf16.mxu0 0
    %280 = vmatpush1.bf16.msra.mxu0 0
    %281 = vmatprep.subr.bf16.mxu0 0
    %282 = vmatpush1.bf16.msra.mxu0 0
    %283 = vmatprep.subr.bf16.mxu0 0
    %284 = vmatpush1.bf16.msra.mxu0 0
    %285 = vmatprep.subr.bf16.mxu0 0
    %286 = vmatpush1.bf16.msra.mxu0 0
    %287 = vmatprep.subr.bf16.mxu0 0
    %288 = vmatpush1.bf16.msra.mxu0 0
    %289 = vmatprep.mubr.bf16.mxu0 0
    %290 = vmatmul.mubr.bf16.gmra.mrb[0].mxu0 %v255
    %v291 = vpop.f32.mrb[0].mxu0
    %v292 = vadd.f32 %v252, %v291
    %v293 = vpop.f32.mrb[0].mxu0
    %v294 = vpop.f32.mrb[0].mxu0
    %v295 = vpop.f32.mrb[0].mxu0
    %296 = vdwg.mxu0
    %v297 = vsel %vm88, %v292, -inf
    %v298 = vrot.slane %v297, 4
    %v299 = vmax.f32 %v297, %v298
    %v300 = vrot.slane %v299, 2
    %v301 = vmax.f32 %v299, %v300
    %v302 = vrot.slane %v301, 1
    %v303 = vmax.f32 %v301, %v302
    %v304 = vsub.f32 %v292, %v303
    %v305 = vmul.f32 %v304, 1.442695
    %v306 = vpow.pop %v305
    %v307 = vsel %vm88, %v306, 0.0
    %v308 = vrot.slane %v307, 4
    %v309 = vadd.f32 %v307, %v308
    %v310 = vrot.slane %v309, 2
    %v311 = vadd.f32 %v309, %v310
    %v312 = vrot.slane %v311, 1
    %v313 = vadd.f32 %v311, %v312
    %v314 = vlog2.pop %v313
    %v315 = vmul.f32 %v314, 0.6931472
    %v316 = vsub.f32 %v304, %v315
    %v317 = vmul.f32 %v306, %v304
    %v318 = vsel %vm88, %v317, 0.0
    %v319 = vrot.slane %v318, 4
    %v320 = vadd.f32 %v318, %v319
    %v321 = vrot.slane %v320, 2
    %v322 = vadd.f32 %v320, %v321
    %v323 = vrot.slane %v322, 1
    %v324 = vadd.f32 %v322, %v323
    %v325 = vrcp.pop %v313
    %v326 = vmul.f32 %v324, %v325
    %v327 = vsub.f32 %v315, %v326
    %v328 = vld [vmem:[%s7] sm:$0xf]
    %v329 = vadd.f32 %v316, %v328
    %v330 = vlaneseq
    %v331 = vshrl.u32 %v330, 7
    %v332 = vsel %vm88, %v329, -inf
    %v333 = vrot.slane %v332, 4
    %v334 = vmax.f32 %v332, %v333
    %v335 = vrot.slane %v334, 2
    %v336 = vmax.f32 %v334, %v335
    %v337 = vrot.slane %v336, 1
    %v338 = vmax.f32 %v336, %v337
    %vm339 = vcmp.ge.f32.partialorder %v329, %v338
    %v340 = vsel %vm339, %v331, 4
    %v341 = vsel %vm88, %v340, 2147483647
    %v342 = vrot.slane %v341, 4
    %vm343 = vcmp.lt.s32.totalorder %v341, %v342
    %v344 = vsel %vm343, %v341, %v342
    %v345 = vrot.slane %v344, 2
    %vm346 = vcmp.lt.s32.totalorder %v344, %v345
    %v347 = vsel %vm346, %v344, %v345
    %v348 = vrot.slane %v347, 1
    %vm349 = vcmp.lt.s32.totalorder %v347, %v348
    %v350 = vsel %vm349, %v347, %v348
    %vm351 = vcmp.eq.s32.totalorder %v331, %v350
    %v352 = vsel %vm351, %v316, 0.0
    %v353 = vsel %vm88, %v352, 0.0
    %v354 = vrot.slane %v353, 4
    %v355 = vadd.f32 %v353, %v354
    %v356 = vrot.slane %v355, 2
    %v357 = vadd.f32 %v355, %v356
    %v358 = vrot.slane %v357, 1
    %v359 = vadd.f32 %v357, %v358
    %vm360 = vcmp.eq.s32.totalorder %v331, 0
    %v361 = vcvt.s32.f32 %v350
    %vm362 = vcmp.eq.s32.totalorder %v331, 1
    %vm363 = vcmp.eq.s32.totalorder %v331, 2
    %v364 = vsel %vm363, %v327, 0.0
    %v365 = vsel %vm362, %v359, %v364
    %v366 = vsel %vm360, %v361, %v365
    %367 = vst [vmem:[#allocation2] sm:$0xff] %v366
    // Predicated region
    $region34: #{tpu_custom_call.1} parent=1 // pred_check
      _
    $region35: #{tpu_custom_call.1} parent=1 // pred_check_branch
      %369 = sbr.rel (0) target = $region37
    $region36: #{tpu_custom_call.1} parent=1 // pred_region
      %s371 = ssub.s32 128, 128
      %372 = vsyncadd [#allocation3], %s371
      %s374 = sshll.u32 [#allocation2], 4
      %s375 = int_to_ptr.vmem [resolvable:$true] %s374
      %377 = dma.vmem_to_hbm [thread:$0]  %s375, 128, %s8, [#allocation3]
    $region37: #{tpu_custom_call.1} parent=1 // pred_fallthru
      _
    // Predicated region
    $region38: #{tpu_custom_call.1} parent=1 // pred_check
      _
    $region39: #{tpu_custom_call.1} parent=1 // pred_check_branch
      %379 = sbr.rel (0) target = $region41
    $region40: #{tpu_custom_call.1} parent=1 // pred_region
      %380 = dma.done [#allocation3], 128
    $region41: #{tpu_custom_call.1} parent=1 // pred_fallthru
      _
    %381 = vsyncpa [#allocation3], 1

</llo_original>
